<compile_context>
chip_gen: v5e
topology: v5e:2x2
jax: 0.10.0
libtpu: 0.0.40
codegen_flags: <defaults>
</compile_context>

<pallas_src>
import functools

import jax
import jax.numpy as jnp
from jax.experimental import pallas as pl
from jax.experimental.pallas import tpu as pltpu


def _round_up(x: int, m: int) -> int:
    return (x + m - 1) // m * m


def _dfploss2_kernel(tgt_ref, sim_ref, dist_ref, thr_ref, out_ref, *,
                     batch_size: int, block_b: int, needs_row_mask: bool):
    sim = sim_ref[...].astype(jnp.float32)     # [TB, C] logits
    dist = dist_ref[...].astype(jnp.float32)   # [TB, C] distances
    thr = thr_ref[...].astype(jnp.float32)     # [1, C]  thresholds
    tgt = tgt_ref[...]                         # [TB, 1] int32 targets

    tb, c = sim.shape
    classes = jax.lax.broadcasted_iota(jnp.int32, (tb, c), 1)
    is_tgt = tgt == classes                    # [TB, C] bool (one-hot)

    # --- cross entropy per row (numerically stable log-softmax) ---
    m = jnp.max(sim, axis=1, keepdims=True)                              # [TB,1]
    lse = jnp.log(jnp.sum(jnp.exp(sim - m), axis=1, keepdims=True)) + m  # [TB,1]
    tgt_logit = jnp.sum(jnp.where(is_tgt, sim, 0.0), axis=1, keepdims=True)
    ce_row = lse - tgt_logit                                             # [TB,1]

    # --- distance terms (dist_within has exactly one non-zero per row) ---
    dist_within = jnp.where(is_tgt, dist, 0.0)                           # [TB,C]
    s_all = jnp.sum(dist_within, axis=1, keepdims=True)                  # [TB,1]
    s_in = jnp.sum(jnp.where(dist_within <= thr, dist_within, 0.0),
                   axis=1, keepdims=True)                                # [TB,1]
    s_out = s_all - s_in
    in_sq = s_in * s_in        # 0.5 * alpha (* theta) applied in the wrapper
    out_sq = s_out * s_out

    if needs_row_mask:
        row = (pl.program_id(0) * block_b
               + jax.lax.broadcasted_iota(jnp.int32, (tb, 1), 0))
        valid = row < batch_size
        ce_row = jnp.where(valid, ce_row, 0.0)
        in_sq = jnp.where(valid, in_sq, 0.0)
        out_sq = jnp.where(valid, out_sq, 0.0)

    # Per-tile partial sums -> SMEM output block (reduced in the wrapper).
    out_ref[0, 0] = jnp.sum(ce_row)
    out_ref[0, 1] = jnp.sum(in_sq)
    out_ref[0, 2] = jnp.sum(out_sq)


def dfploss2(sim_fea2cen, dis_fea2cen, thresholds, targets,
             alpha: float = 1.0, beta: float = 1.0, theta: float = 2.0,
             block_b=None):
    """Pallas implementation of DFPLoss2.forward.

    sim_fea2cen: [B, C] float logits
    dis_fea2cen: [B, C] float distances
    thresholds:  [C]    float per-class thresholds
    targets:     [B]    int class labels
    """
    del beta  # stored but unused in the reference forward; kept for interface parity
    B, C = sim_fea2cen.shape

    # --- batch tile size: 2 streams x 2 pipeline buffers x TB x C x 4B <= ~24 MiB ---
    if block_b is None:
        vmem_budget = 24 * 1024 * 1024
        bytes_per_row = 2 * 2 * C * 4
        tb = vmem_budget // bytes_per_row
        tb = max(8, min(1024, (tb // 8) * 8))
    else:
        tb = max(8, (int(block_b) // 8) * 8)
    tb = min(tb, _round_up(B, 8))

    b_pad = _round_up(B, tb)
    nb = b_pad // tb
    needs_row_mask = (b_pad != B)

    tgt2d = targets.astype(jnp.int32).reshape(B, 1)
    thr2d = thresholds.reshape(1, C)
    sim = sim_fea2cen
    dist = dis_fea2cen
    if needs_row_mask:
        pad = b_pad - B
        sim = jnp.pad(sim, ((0, pad), (0, 0)))
        dist = jnp.pad(dist, ((0, pad), (0, 0)))
        tgt2d = jnp.pad(tgt2d, ((0, pad), (0, 0)))

    kernel = functools.partial(_dfploss2_kernel, batch_size=B, block_b=tb,
                               needs_row_mask=needs_row_mask)

    in_bytes = (sim.size * sim.dtype.itemsize +
                dist.size * dist.dtype.itemsize +
                tgt2d.size * 4 + thr2d.size * thr2d.dtype.itemsize)

    partials = pl.pallas_call(
        kernel,
        out_shape=jax.ShapeDtypeStruct((nb, 3), jnp.float32),
        grid=(nb,),
        in_specs=[
            pl.BlockSpec((tb, 1), lambda i: (i, 0)),   # targets  [B,1] int32
            pl.BlockSpec((tb, C), lambda i: (i, 0)),   # sim      [B,C]
            pl.BlockSpec((tb, C), lambda i: (i, 0)),   # dist     [B,C]
            pl.BlockSpec((1, C), lambda i: (0, 0)),    # thr      [1,C]
        ],
        out_specs=pl.BlockSpec((1, 3), lambda i: (i, 0),
                               memory_space=pltpu.MemorySpace.SMEM),
        compiler_params=pltpu.CompilerParams(
            dimension_semantics=("parallel",),
            vmem_limit_bytes=40 * 1024 * 1024),
        cost_estimate=pl.CostEstimate(
            flops=12 * b_pad * C,
            transcendentals=b_pad * C,
            bytes_accessed=in_bytes + nb * 3 * 4),
    )(tgt2d, sim, dist, thr2d)

    sums = jnp.sum(partials, axis=0)           # tiny [3] reduce in plain JAX
    inv_b = 1.0 / float(B)
    loss_similarity = sums[0] * inv_b
    loss_distance_in = (0.5 * float(alpha) * inv_b) * sums[1]
    loss_distance_out = (0.5 * float(alpha) * float(theta) * inv_b) * sums[2]
    total = loss_similarity + loss_distance_in + loss_distance_out

    return {
        'total': total,
        'similarity': loss_similarity,
        'distance_in': loss_distance_in,
        'distance_out': loss_distance_out,
        'generate': loss_distance_out,
    }


def _reference(sim, dist, thr, targets, alpha=1.0, theta=2.0):
    B, C = sim.shape
    mask = jax.nn.one_hot(targets, C, dtype=jnp.float32)
    logp = jax.nn.log_softmax(sim.astype(jnp.float32), axis=1)
    ce = -jnp.mean(jnp.sum(logp * mask, axis=1))
    dist_within = dist.astype(jnp.float32) * mask
    mask_in = (dist_within <= thr[None, :]).astype(jnp.float32)
    mask_out = (dist_within > thr[None, :]).astype(jnp.float32)
    lin = 0.5 * jnp.sum(dist_within * mask_in, axis=1) ** 2
    lin = alpha * jnp.sum(lin) / B
    lout = 0.5 * jnp.sum(dist_within * mask_out, axis=1) ** 2
    lout = alpha * theta * jnp.sum(lout) / B
    return ce + lin + lout, ce, lin, lout


if __name__ == "__main__":
    key = jax.random.PRNGKey(0)

    def make_inputs(B, C, k):
        k1, k2, k3, k4 = jax.random.split(k, 4)
        sim = jax.random.normal(k1, (B, C), dtype=jnp.float32)
        dist = jnp.abs(jax.random.normal(k2, (B, C), dtype=jnp.float32)) * 2.0
        thr = jnp.abs(jax.random.normal(k3, (C,), dtype=jnp.float32)) + 0.5
        tgt = jax.random.randint(k4, (B,), 0, C, dtype=jnp.int32)
        return sim, dist, thr, tgt

    cases = [
        dict(B=8, C=16, block_b=None),    # single tile
        dict(B=13, C=16, block_b=None),   # ragged batch -> in-kernel row mask
        dict(B=24, C=16, block_b=8),      # multi-tile grid, per-tile partials
    ]

    for idx, cfg in enumerate(cases):
        sim, dist, thr, tgt = make_inputs(cfg['B'], cfg['C'],
                                          jax.random.fold_in(key, idx))
        out = dfploss2(sim, dist, thr, tgt, alpha=1.0, beta=1.0, theta=2.0,
                       block_b=cfg['block_b'])
        jax.block_until_ready(out['total'])

        ref_total, ref_ce, ref_in, ref_out = _reference(sim, dist, thr, tgt,
                                                        alpha=1.0, theta=2.0)
        assert jnp.allclose(out['total'], ref_total, rtol=1e-5, atol=1e-5)
        assert jnp.allclose(out['similarity'], ref_ce, rtol=1e-5, atol=1e-5)
        assert jnp.allclose(out['distance_in'], ref_in, rtol=1e-5, atol=1e-5)
        assert jnp.allclose(out['distance_out'], ref_out, rtol=1e-5, atol=1e-5)

    print("KERNEL_OK")
</pallas_src>

<mosaic_0001>
module attributes {stable_mosaic.version = 11 : i64} {
  func.func @_dfploss2_kernel(%arg0: i32, %arg1: memref<8x1xi32, #tpu.memory_space<vmem>>, %arg2: memref<8x16xf32, #tpu.memory_space<vmem>>, %arg3: memref<8x16xf32, #tpu.memory_space<vmem>>, %arg4: memref<1x16xf32, #tpu.memory_space<vmem>>, %arg5: memref<1x3xf32, #tpu.memory_space<smem>>) attributes {dimension_semantics = [#tpu.dimension_semantics<parallel>], iteration_bounds = array<i64: 1>, scalar_prefetch = 0 : i64, scratch_operands = 0 : i64, tpu.core_type = #tpu.core_type<tc>, window_params = [{transform_indices = @transform_0, window_bounds = array<i64: 8, 1>}, {transform_indices = @transform_1, window_bounds = array<i64: 8, 16>}, {transform_indices = @transform_2, window_bounds = array<i64: 8, 16>}, {pipeline_mode = #tpu.pipeline_mode<synchronous>, transform_indices = @transform_3, window_bounds = array<i64: 1, 16>}, {transform_indices = @transform_4, window_bounds = array<i64: 1, 3>}]} {
    %c0 = arith.constant 0 : index
    %c0_0 = arith.constant 0 : index
    %0 = vector.load %arg2[%c0, %c0_0] : memref<8x16xf32, #tpu.memory_space<vmem>>, vector<8x16xf32>
    %c0_1 = arith.constant 0 : index
    %c0_2 = arith.constant 0 : index
    %1 = vector.load %arg3[%c0_1, %c0_2] : memref<8x16xf32, #tpu.memory_space<vmem>>, vector<8x16xf32>
    %c0_3 = arith.constant 0 : index
    %c0_4 = arith.constant 0 : index
    %2 = vector.load %arg4[%c0_3, %c0_4] : memref<1x16xf32, #tpu.memory_space<vmem>>, vector<1x16xf32>
    %c0_5 = arith.constant 0 : index
    %c0_6 = arith.constant 0 : index
    %3 = vector.load %arg1[%c0_5, %c0_6] : memref<8x1xi32, #tpu.memory_space<vmem>>, vector<8x1xi32>
    %4 = tpu.iota {dimensions = array<i32: 1>} : vector<8x16xi32>
    %5 = vector.broadcast %3 : vector<8x1xi32> to vector<8x16xi32>
    %6 = arith.cmpi eq, %5, %4 : vector<8x16xi32>
    %cst = arith.constant dense<0xFF800000> : vector<8xf32>
    %7 = vector.multi_reduction <maximumf>, %0, %cst [1] : vector<8x16xf32> to vector<8xf32>
    %8 = vector.shape_cast %7 : vector<8xf32> to vector<8x1xf32>
    %9 = vector.broadcast %8 : vector<8x1xf32> to vector<8x16xf32>
    %10 = arith.subf %0, %9 : vector<8x16xf32>
    %11 = math.exp %10 : vector<8x16xf32>
    %cst_7 = arith.constant dense<0.000000e+00> : vector<8xf32>
    %12 = vector.multi_reduction <add>, %11, %cst_7 [1] : vector<8x16xf32> to vector<8xf32>
    %13 = vector.shape_cast %12 : vector<8xf32> to vector<8x1xf32>
    %14 = math.log %13 : vector<8x1xf32>
    %15 = arith.addf %14, %8 : vector<8x1xf32>
    %cst_8 = arith.constant 0.000000e+00 : f32
    %16 = vector.broadcast %cst_8 : f32 to vector<8x16xf32>
    %17 = arith.select %6, %0, %16 : vector<8x16xi1>, vector<8x16xf32>
    %cst_9 = arith.constant dense<0.000000e+00> : vector<8xf32>
    %18 = vector.multi_reduction <add>, %17, %cst_9 [1] : vector<8x16xf32> to vector<8xf32>
    %19 = vector.shape_cast %18 : vector<8xf32> to vector<8x1xf32>
    %20 = arith.subf %15, %19 : vector<8x1xf32>
    %cst_10 = arith.constant 0.000000e+00 : f32
    %21 = vector.broadcast %cst_10 : f32 to vector<8x16xf32>
    %22 = arith.select %6, %1, %21 : vector<8x16xi1>, vector<8x16xf32>
    %cst_11 = arith.constant dense<0.000000e+00> : vector<8xf32>
    %23 = vector.multi_reduction <add>, %22, %cst_11 [1] : vector<8x16xf32> to vector<8xf32>
    %24 = vector.shape_cast %23 : vector<8xf32> to vector<8x1xf32>
    %25 = vector.broadcast %2 : vector<1x16xf32> to vector<8x16xf32>
    %26 = arith.cmpf ole, %22, %25 : vector<8x16xf32>
    %cst_12 = arith.constant 0.000000e+00 : f32
    %27 = vector.broadcast %cst_12 : f32 to vector<8x16xf32>
    %28 = arith.select %26, %22, %27 : vector<8x16xi1>, vector<8x16xf32>
    %cst_13 = arith.constant dense<0.000000e+00> : vector<8xf32>
    %29 = vector.multi_reduction <add>, %28, %cst_13 [1] : vector<8x16xf32> to vector<8xf32>
    %30 = vector.shape_cast %29 : vector<8xf32> to vector<8x1xf32>
    %31 = arith.subf %24, %30 : vector<8x1xf32>
    %32 = arith.mulf %30, %30 : vector<8x1xf32>
    %33 = arith.mulf %31, %31 : vector<8x1xf32>
    %34 = vector.shape_cast %20 : vector<8x1xf32> to vector<1x8x1xf32>
    %cst_14 = arith.constant dense<0.000000e+00> : vector<1xf32>
    %35 = vector.multi_reduction <add>, %34, %cst_14 [1, 2] : vector<1x8x1xf32> to vector<1xf32>
    %36 = vector.shape_cast %35 : vector<1xf32> to vector<1x1x1xf32>
    %37 = vector.extract %36[0, 0, 0] : f32 from vector<1x1x1xf32>
    %c0_15 = arith.constant 0 : index
    %c0_16 = arith.constant 0 : index
    %38 = memref.load %arg5[%c0_15, %c0_16] : memref<1x3xf32, #tpu.memory_space<smem>>
    memref.store %37, %arg5[%c0_15, %c0_16] : memref<1x3xf32, #tpu.memory_space<smem>>
    %39 = vector.shape_cast %32 : vector<8x1xf32> to vector<1x8x1xf32>
    %cst_17 = arith.constant dense<0.000000e+00> : vector<1xf32>
    %40 = vector.multi_reduction <add>, %39, %cst_17 [1, 2] : vector<1x8x1xf32> to vector<1xf32>
    %41 = vector.shape_cast %40 : vector<1xf32> to vector<1x1x1xf32>
    %42 = vector.extract %41[0, 0, 0] : f32 from vector<1x1x1xf32>
    %c0_18 = arith.constant 0 : index
    %c1 = arith.constant 1 : index
    %43 = memref.load %arg5[%c0_18, %c1] : memref<1x3xf32, #tpu.memory_space<smem>>
    memref.store %42, %arg5[%c0_18, %c1] : memref<1x3xf32, #tpu.memory_space<smem>>
    %44 = vector.shape_cast %33 : vector<8x1xf32> to vector<1x8x1xf32>
    %cst_19 = arith.constant dense<0.000000e+00> : vector<1xf32>
    %45 = vector.multi_reduction <add>, %44, %cst_19 [1, 2] : vector<1x8x1xf32> to vector<1xf32>
    %46 = vector.shape_cast %45 : vector<1xf32> to vector<1x1x1xf32>
    %47 = vector.extract %46[0, 0, 0] : f32 from vector<1x1x1xf32>
    %c0_20 = arith.constant 0 : index
    %c2 = arith.constant 2 : index
    %48 = memref.load %arg5[%c0_20, %c2] : memref<1x3xf32, #tpu.memory_space<smem>>
    memref.store %47, %arg5[%c0_20, %c2] : memref<1x3xf32, #tpu.memory_space<smem>>
    return
  }
  func.func @transform_0(%arg0: i32) -> (i32, i32) {
    %c0_i32 = arith.constant 0 : i32
    %c0_i32_0 = arith.constant 0 : i32
    return %arg0, %c0_i32 : i32, i32
  }
  func.func @transform_1(%arg0: i32) -> (i32, i32) {
    %c0_i32 = arith.constant 0 : i32
    %c0_i32_0 = arith.constant 0 : i32
    return %arg0, %c0_i32 : i32, i32
  }
  func.func @transform_2(%arg0: i32) -> (i32, i32) {
    %c0_i32 = arith.constant 0 : i32
    %c0_i32_0 = arith.constant 0 : i32
    return %arg0, %c0_i32 : i32, i32
  }
  func.func @transform_3(%arg0: i32) -> (i32, i32) {
    %c0_i32 = arith.constant 0 : i32
    %c0_i32_0 = arith.constant 0 : i32
    %c0_i32_1 = arith.constant 0 : i32
    return %c0_i32, %c0_i32_0 : i32, i32
  }
  func.func @transform_4(%arg0: i32) -> (i32, i32) {
    %c0_i32 = arith.constant 0 : i32
    %c0_i32_0 = arith.constant 0 : i32
    return %arg0, %c0_i32 : i32, i32
  }
}

</mosaic_0001>

<llo_original>
// kernel: tpu_custom_call.1
$region0: #{tpu_custom_call.1}
  #allocation0 [shape = 'u32[]', space=smem, size = 0x4, offset = 0x4, fixed_abs, tag = 'smem constant byte address 0x4 - core index']
  #allocation1 [shape = 'u32[72,128]{1,0:T(1,128)}', space=vmem, size = 0x9000, scoped, tag = 'internal scratch']
  %s0 = inlined_call_operand.vmem [shape: s32[8,1], index: 0, kind: input, shape index: {}]
  %s1 = inlined_call_operand.vmem [shape: f32[8,16], index: 1, kind: input, shape index: {}]
  %s2 = inlined_call_operand.hbm [shape: f32[8,16], index: 2, kind: input, shape index: {}]
  %s3 = inlined_call_operand.vmem [shape: f32[1,16], index: 3, kind: input, shape index: {}]
  %s4 = inlined_call_operand.hbm [shape: f32[1,3], index: 4, kind: output, shape index: {}]
  %s5 = sld [smem:[#allocation0]]
  $region30: #{tpu_custom_call.1} parent=0
    _
  %s7 = ssub.s32 1, %s5
  %s8 = scalar_select 0, %s7, %s5
  $region1: #{tpu_custom_call.1} parent=0
    #allocation2 [shape = 'u8[4096]{0}', space=vmem, size = 0x1000, scoped, tag = 'input window, operand 2, single buffered']
    #allocation3 [shape = 's32[1]{0}', space=sflag, size = 0x4, scoped, tag = 'scoped memory for tpu_custom_call.1']
    #allocation4 [shape = 's32[1]{0}', space=sflag, size = 0x4, scoped, tag = 'scoped memory for tpu_custom_call.1']
    #allocation5 [shape = 'u8[512]{0}', space=smem, size = 0x200, scoped, tag = 'output window, operand 0, single buffered']
    %9 = vsyncpa [#allocation3], 0
    %10 = vsyncpa [#allocation4], 0
    // Predicated region
    $region2: #{tpu_custom_call.1} parent=1 // pred_check
      _
    $region3: #{tpu_custom_call.1} parent=1 // pred_check_branch
      %12 = sbr.rel (0) target = $region5
    $region4: #{tpu_custom_call.1} parent=1 // pred_region
      _
    $region5: #{tpu_custom_call.1} parent=1 // pred_fallthru
      _
    // Predicated region
    $region6: #{tpu_custom_call.1} parent=1 // pred_check
      _
    $region7: #{tpu_custom_call.1} parent=1 // pred_check_branch
      %14 = sbr.rel (0) target = $region9
    $region8: #{tpu_custom_call.1} parent=1 // pred_region
      _
    $region9: #{tpu_custom_call.1} parent=1 // pred_fallthru
      _
    // Predicated region
    $region10: #{tpu_custom_call.1} parent=1 // pred_check
      _
    $region11: #{tpu_custom_call.1} parent=1 // pred_check_branch
      %16 = sbr.rel (0) target = $region13
    $region12: #{tpu_custom_call.1} parent=1 // pred_region
      %18 = vsyncadd [#allocation3], 0
      %s20 = sshll.u32 %s2, 4
      %s21 = int_to_ptr.hbm [resolvable:$true] %s20
      %s22 = sshll.u32 [#allocation2], 4
      %s23 = int_to_ptr.vmem [resolvable:$true] %s22
      %25 = dma.hbm_to_vmem [thread:$0]  %s21, 128, %s23, [#allocation3]
    $region13: #{tpu_custom_call.1} parent=1 // pred_fallthru
      _
    // Predicated region
    $region14: #{tpu_custom_call.1} parent=1 // pred_check
      _
    $region15: #{tpu_custom_call.1} parent=1 // pred_check_branch
      %27 = sbr.rel (0) target = $region17
    $region16: #{tpu_custom_call.1} parent=1 // pred_region
      _
    $region17: #{tpu_custom_call.1} parent=1 // pred_fallthru
      _
    // Predicated region
    $region18: #{tpu_custom_call.1} parent=1 // pred_check
      _
    $region19: #{tpu_custom_call.1} parent=1 // pred_check_branch
      %29 = sbr.rel (0) target = $region21
    $region20: #{tpu_custom_call.1} parent=1 // pred_region
      %31 = dma.done [#allocation3], 128
    $region21: #{tpu_custom_call.1} parent=1 // pred_fallthru
      _
    %v32 = vld [vmem:[%s1] sm:$0xff]
    %v33 = vld [vmem:[#allocation2] sm:$0xff]
    %v34 = vld [vmem:[%s3] sm:$0x1]
    %v35 = vld [vmem:[%s0] sm:$0xff]
    %v36 = vlaneseq
    %v37 = vand.u32 %v36, 127
    %38 = vset.pattern.permute.xlu0 0
    %39 = vperm.xlu0 %38, %v35
    %v40 = vpop.permute.xlu0 %39
    %vm41 = vcmp.eq.s32.totalorder %v40, %v37
    %vm42 = vcmask 130048
    %v43 = vsel %vm42, %v32, -inf
    %44 = vmax.xlane.f32.xlu0 %v43
    %v45 = vpop.xlane.xlu0 %44
    %v46 = vsub.f32 %v32, %v45
    %v47 = vmul.f32 %v46, 1.442695
    %v48 = vpow.pop %v47
    %v49 = vsel %vm42, %v48, 0.0
    %50 = vadd.xlane.f32.xlu0 %v49
    %v51 = vpop.xlane.xlu0 %50
    %v52 = vlog2.pop %v51
    %v53 = vmul.f32 %v52, 0.6931472
    %v54 = vadd.f32 %v53, %v45
    %v55 = vsel %vm41, %v32, 0.0
    %v56 = vsel %vm42, %v55, 0.0
    %57 = vadd.xlane.f32.xlu0 %v56
    %v58 = vpop.xlane.xlu0 %57
    %v59 = vsub.f32 %v54, %v58
    %v60 = vsel %vm41, %v33, 0.0
    %v61 = vsel %vm42, %v60, 0.0
    %62 = vadd.xlane.f32.xlu0 %v61
    %v63 = vpop.xlane.xlu0 %62
    %v65 = vperm.slane %v34, 0
    %vm67 = vcmp.le.f32.partialorder %v60, %v65
    %v68 = vsel %vm67, %v60, 0.0
    %v69 = vsel %vm42, %v68, 0.0
    %70 = vadd.xlane.f32.xlu0 %v69
    %v71 = vpop.xlane.xlu0 %70
    %v72 = vsub.f32 %v63, %v71
    %v73 = vmul.f32 %v71, %v71
    %v74 = vmul.f32 %v72, %v72
    %vm75 = vcmask 7168
    %v76 = vsel %vm75, %v59, 0.0
    %77 = vadd.xlane.f32.xlu0 %v76
    %v78 = vpop.xlane.xlu0 %77
    %v79 = vrot.slane %v78, 4
    %v80 = vadd.f32 %v78, %v79
    %v81 = vrot.slane %v80, 2
    %v82 = vadd.f32 %v80, %v81
    %v83 = vrot.slane %v82, 1
    %v84 = vadd.f32 %v82, %v83
    %s85 = vtos %v84
    %s86 = scalar_lea.smem [#allocation5], 0
    %87 = sst [smem:[%s86]] %s85
    %v88 = vsel %vm75, %v73, 0.0
    %89 = vadd.xlane.f32.xlu0 %v88
    %v90 = vpop.xlane.xlu0 %89
    %v91 = vrot.slane %v90, 4
    %v92 = vadd.f32 %v90, %v91
    %v93 = vrot.slane %v92, 2
    %v94 = vadd.f32 %v92, %v93
    %v95 = vrot.slane %v94, 1
    %v96 = vadd.f32 %v94, %v95
    %s97 = vtos %v96
    %s98 = scalar_lea.smem [#allocation5], 1
    %99 = sst [smem:[%s98]] %s97
    %v100 = vsel %vm75, %v74, 0.0
    %101 = vadd.xlane.f32.xlu0 %v100
    %v102 = vpop.xlane.xlu0 %101
    %v103 = vrot.slane %v102, 4
    %v104 = vadd.f32 %v102, %v103
    %v105 = vrot.slane %v104, 2
    %v106 = vadd.f32 %v104, %v105
    %v107 = vrot.slane %v106, 1
    %v108 = vadd.f32 %v106, %v107
    %s109 = vtos %v108
    %s110 = scalar_lea.smem [#allocation5], 2
    %111 = sst [smem:[%s110]] %s109
    // Predicated region
    $region22: #{tpu_custom_call.1} parent=1 // pred_check
      _
    $region23: #{tpu_custom_call.1} parent=1 // pred_check_branch
      %113 = sbr.rel (0) target = $region25
    $region24: #{tpu_custom_call.1} parent=1 // pred_region
      %115 = vsyncadd [#allocation4], 0
      %s117 = sshll.u32 %s4, 4
      %s118 = int_to_ptr.hbm [resolvable:$true] %s117
      %120 = dma.smem_to_hbm [#allocation5], 16, %s118, [#allocation4]
    $region25: #{tpu_custom_call.1} parent=1 // pred_fallthru
      _
    // Predicated region
    $region26: #{tpu_custom_call.1} parent=1 // pred_check
      _
    $region27: #{tpu_custom_call.1} parent=1 // pred_check_branch
      %122 = sbr.rel (0) target = $region29
    $region28: #{tpu_custom_call.1} parent=1 // pred_region
      %124 = dma.done [#allocation4], 16
    $region29: #{tpu_custom_call.1} parent=1 // pred_fallthru
      _
    %125 = sfence
    %126 = vsyncpa [#allocation3], 1
    %127 = vsyncpa [#allocation4], 1

</llo_original>
